<compile_context>
chip_gen: v7x
topology: tpu7x:2x2x1
jax: 0.10.0
libtpu: 0.0.40
codegen_flags: <defaults>
</compile_context>

<pallas_src>
import functools

import jax
import jax.numpy as jnp
from jax import lax
from jax.experimental import pallas as pl
from jax.experimental.pallas import tpu as pltpu


def _round_up(x, m):
    return ((x + m - 1) // m) * m


# ----------------------------- in-kernel building blocks ------------------------

def _gather_embeddings(idx_ref, table_ref):
    """Exact in-kernel row gather: one-hot (BT, Vt) f32 @ table (Vt, D) f32 on the MXU."""
    bt = idx_ref.shape[0]
    vt = table_ref.shape[0]
    col = lax.broadcasted_iota(jnp.int32, (bt, vt), 1)
    onehot = (col == idx_ref[...]).astype(jnp.float32)          # exact 0/1 selector
    return jnp.dot(onehot, table_ref[...], preferred_element_type=jnp.float32)  # (BT, D) f32


def _compute_logits(idx_ref, table_ref, wcat_ref, bias_ref, seq_len):
    emb = _gather_embeddings(idx_ref, table_ref)                # (BT, D) f32
    bt, d = emb.shape
    # Previous-token tap: circular sublane roll (XLU slot, effectively free); each sequence's
    # t==0 row must see a zero "previous token", enforced with an in-kernel iota mask.
    # NOTE: valid only because the whole (BT, D) slab lives in one grid step; if BT is tiled,
    # the roll wraps within a tile -> use a 1-row halo or a carried last-row scratch instead.
    rolled = pltpu.roll(emb, shift=1, axis=0)
    row = lax.broadcasted_iota(jnp.int32, (bt, 1), 0)
    emb_prev = jnp.where(row % seq_len == 0, 0.0, rolled)
    # Fused operand built in-register (no VMEM scratch round-trip); bf16 operands, f32 accumulate.
    x = jnp.concatenate([emb_prev, emb], axis=1).astype(jnp.bfloat16)      # (BT, 2D) bf16
    return jnp.dot(x, wcat_ref[...], preferred_element_type=jnp.float32) + bias_ref[...]


def _mean_cross_entropy(logits, tgt_ref):
    # Padded vocab lanes carry ~-1e30 bias -> exp underflows to 0, so they drop out of the LSE.
    # Softmax / CE math stays f32 (v5e's VPU/EUP have no bf16 path; converts would cost, not save).
    m = jnp.max(logits, axis=-1, keepdims=True)
    lse = m + jnp.log(jnp.sum(jnp.exp(logits - m), axis=-1, keepdims=True))
    col = lax.broadcasted_iota(jnp.int32, logits.shape, 1)
    tgt_logit = jnp.sum(jnp.where(col == tgt_ref[...], logits, 0.0), axis=-1, keepdims=True)
    return jnp.sum(lse - tgt_logit) * (1.0 / logits.shape[0])


# ----------------------------------- kernels ------------------------------------

def bigram_logits_kernel(idx_ref, table_ref, wcat_ref, bias_ref, logits_ref, *, seq_len):
    logits_ref[...] = _compute_logits(idx_ref, table_ref, wcat_ref, bias_ref, seq_len)


def bigram_logits_loss_kernel(idx_ref, table_ref, wcat_ref, bias_ref, tgt_ref,
                              logits_ref, loss_ref, *, seq_len):
    logits = _compute_logits(idx_ref, table_ref, wcat_ref, bias_ref, seq_len)
    logits_ref[...] = logits.astype(logits_ref.dtype)   # bf16 store: halves HBM writeback
    loss_ref[0, 0] = _mean_cross_entropy(logits, tgt_ref)


def bigram_loss_kernel(idx_ref, table_ref, wcat_ref, bias_ref, tgt_ref, loss_ref, *, seq_len):
    logits = _compute_logits(idx_ref, table_ref, wcat_ref, bias_ref, seq_len)
    loss_ref[0, 0] = _mean_cross_entropy(logits, tgt_ref)


# --------------------------- parameter preprocessing ----------------------------

def prepare_params(params, *, lane_multiple=128):
    """One-time weight fusion / padding / bf16 cast (hoisted out of forward).

    lane_multiple=128 matches v5e's 4x128^2 MXU and minimizes the (tiny) logits writeback here;
    pass 256 when scaling the vocab on v6e/v7x so each 2x256^2 vmatmul pass is full.
    """
    table = params["emb"].astype(jnp.float32)               # (V, D)
    conv_w = params["w"].astype(jnp.float32)                # (V, D, 2)
    conv_b = params["b"].astype(jnp.float32)                # (V,)
    V, D = table.shape
    Vp = _round_up(V, lane_multiple)                        # lane-dense logits width
    Vt = _round_up(V, 128)                                  # contraction dim of in-kernel gather
    table_pad = jnp.pad(table, ((0, Vt - V), (0, 0)))       # (Vt, D); pad rows never indexed
    # logits[t] = emb[t-1] @ W[:,:,0].T + emb[t] @ W[:,:,1].T + b
    wcat = jnp.concatenate([conv_w[:, :, 0].T, conv_w[:, :, 1].T], axis=0)    # (2D, V)
    wcat = jnp.pad(wcat, ((0, 0), (0, Vp - V))).astype(jnp.bfloat16)          # (2D, Vp) bf16
    # Padded vocab lanes get a huge negative bias so they vanish from softmax / CE / argmax.
    bias = jnp.full((1, Vp), -1e30, dtype=jnp.float32).at[0, :V].set(conv_b)  # (1, Vp) f32
    return {"table": table_pad, "wcat": wcat, "bias": bias, "V": V, "D": D, "Vp": Vp, "Vt": Vt}


# ----------------------------- Python wrapper ----------------------------------

def _compiler_params():
    return pltpu.CompilerParams(
        # grid is size 1 here; with a tiled BT grid mark that axis "parallel" (v7x: 2 TCs).
        dimension_semantics=("arbitrary",),
        # Tiny footprint here. At scale: v5e/v6e can raise this (128 MiB physical) and keep the
        # weight resident; v7x has only 64 MiB -> tile the vocab axis instead.
        vmem_limit_bytes=32 * 1024 * 1024,
    )


def _in_specs(BT, D, Vt, Vp, with_targets):
    specs = [
        pl.BlockSpec((BT, 1), lambda i: (0, 0)),             # token ids (i32)
        pl.BlockSpec((Vt, D), lambda i: (0, 0)),             # padded embedding table (resident)
        pl.BlockSpec((2 * D, Vp), lambda i: (0, 0)),         # fused conv taps (resident, bf16)
        pl.BlockSpec((1, Vp), lambda i: (0, 0)),             # padded bias (resident)
    ]
    if with_targets:
        specs.append(pl.BlockSpec((BT, 1), lambda i: (0, 0)))  # targets (i32)
    return specs


def _cost_estimate(BT, D, Vt, Vp, *, with_loss, logits_bytes):
    flops = 2 * BT * Vt * D + 2 * BT * (2 * D) * Vp           # gather matmul + logits matmul
    transcendentals = BT * Vp if with_loss else 0              # exp in the LSE
    bytes_in = BT * 4 + Vt * D * 4 + (2 * D) * Vp * 2 + Vp * 4 + (BT * 4 if with_loss else 0)
    bytes_out = logits_bytes + (4 if with_loss else 0)
    return pl.CostEstimate(flops=int(flops), transcendentals=int(transcendentals),
                           bytes_accessed=int(bytes_in + bytes_out))


def bigram_forward(idx, prep, targets=None):
    """Mirror of BigramLanguageModel.forward: returns (logits, loss).

    Logits come back in the kernel's lane-dense padded layout (last dim Vp >= vocab); columns
    >= vocab hold ~-1e30 so softmax/argmax over the padded width are unchanged. Slice
    [..., :vocab] only if an exact-width view is required (do NOT sum/mean the padded lanes).
    With targets, logits are stored bf16 (accuracy is already bf16-limited by the matmul).
    """
    D, Vp, Vt = prep["D"], prep["Vp"], prep["Vt"]
    B, T = idx.shape
    BT = B * T
    idx2 = idx.reshape(BT, 1).astype(jnp.int32)

    if targets is None:
        logits_pad = pl.pallas_call(
            functools.partial(bigram_logits_kernel, seq_len=T),
            out_shape=jax.ShapeDtypeStruct((BT, Vp), jnp.float32),
            grid=(1,),
            in_specs=_in_specs(BT, D, Vt, Vp, with_targets=False),
            out_specs=pl.BlockSpec((BT, Vp), lambda i: (0, 0)),
            compiler_params=_compiler_params(),
            cost_estimate=_cost_estimate(BT, D, Vt, Vp, with_loss=False,
                                         logits_bytes=BT * Vp * 4),
        )(idx2, prep["table"], prep["wcat"], prep["bias"])
        return logits_pad.reshape(B, T, Vp), None

    tgt = targets.reshape(BT, 1).astype(jnp.int32)
    logits_pad, loss = pl.pallas_call(
        functools.partial(bigram_logits_loss_kernel, seq_len=T),
        out_shape=(
            jax.ShapeDtypeStruct((BT, Vp), jnp.bfloat16),
            jax.ShapeDtypeStruct((1, 1), jnp.float32),
        ),
        grid=(1,),
        in_specs=_in_specs(BT, D, Vt, Vp, with_targets=True),
        out_specs=(
            pl.BlockSpec((BT, Vp), lambda i: (0, 0)),
            pl.BlockSpec((1, 1), lambda i: (0, 0), memory_space=pltpu.MemorySpace.SMEM),
        ),
        compiler_params=_compiler_params(),
        cost_estimate=_cost_estimate(BT, D, Vt, Vp, with_loss=True,
                                     logits_bytes=BT * Vp * 2),
    )(idx2, prep["table"], prep["wcat"], prep["bias"], tgt)
    return logits_pad, loss[0, 0]        # (BT, Vp) bf16 padded layout, scalar loss


def bigram_loss(idx, prep, targets):
    """Training-step helper: fused forward + mean cross-entropy, NO logits writeback to HBM."""
    D, Vp, Vt = prep["D"], prep["Vp"], prep["Vt"]
    B, T = idx.shape
    BT = B * T
    idx2 = idx.reshape(BT, 1).astype(jnp.int32)
    tgt = targets.reshape(BT, 1).astype(jnp.int32)
    loss = pl.pallas_call(
        functools.partial(bigram_loss_kernel, seq_len=T),
        out_shape=jax.ShapeDtypeStruct((1, 1), jnp.float32),
        grid=(1,),
        in_specs=_in_specs(BT, D, Vt, Vp, with_targets=True),
        out_specs=pl.BlockSpec((1, 1), lambda i: (0, 0), memory_space=pltpu.MemorySpace.SMEM),
        compiler_params=_compiler_params(),
        cost_estimate=_cost_estimate(BT, D, Vt, Vp, with_loss=True, logits_bytes=0),
    )(idx2, prep["table"], prep["wcat"], prep["bias"], tgt)
    return loss[0, 0]


# ----------------------------- Reference (pure JAX) -----------------------------

def bigram_forward_ref(idx, params, targets=None):
    table, conv_w, conv_b = params["emb"], params["w"], params["b"]
    V, D = table.shape
    B, T = idx.shape
    emb = jnp.take(table, idx.astype(jnp.int32), axis=0)             # (B, T, D)
    x = jnp.transpose(emb, (0, 2, 1))                                # (B, D, T)  (NCW)
    conv = lax.conv_general_dilated(
        x, conv_w, window_strides=(1,), padding=[(1, 1)],
        dimension_numbers=("NCH", "OIH", "NCH"))                     # (B, V, T+1)
    logits = jnp.transpose(conv, (0, 2, 1)) + conv_b[None, None, :]  # (B, T+1, V)
    logits = logits[:, :-1, :]                                       # (B, T, V)
    if targets is None:
        return logits, None
    lf = logits.reshape(B * T, V)
    logp = jax.nn.log_softmax(lf, axis=-1)
    nll = -logp[jnp.arange(B * T), targets.reshape(B * T).astype(jnp.int32)]
    return logits, jnp.mean(nll)


# ----------------------------------- main ---------------------------------------

if __name__ == "__main__":
    vocab_size = 65   # plays the role of len(set(text))
    d_model = 8
    B, T = 2, 8

    key = jax.random.PRNGKey(0)
    k_emb, k_w, k_b, k_idx, k_tgt = jax.random.split(key, 5)

    params = {
        "emb": jax.random.normal(k_emb, (vocab_size, d_model), dtype=jnp.float32),
        "w": jax.random.normal(k_w, (vocab_size, d_model, 2), dtype=jnp.float32) * 0.1,
        "b": jax.random.normal(k_b, (vocab_size,), dtype=jnp.float32) * 0.1,
    }
    prep = prepare_params(params)   # one-time: weight fusion, padding, bf16 cast

    idx = jax.random.randint(k_idx, (B, T), 0, vocab_size, dtype=jnp.int32)
    targets = jax.random.randint(k_tgt, (B, T), 0, vocab_size, dtype=jnp.int32)

    ref_logits, ref_loss = bigram_forward_ref(idx, params, targets)

    # Targets path: fused logits (bf16, padded layout) + loss.
    logits_pad, loss = bigram_forward(idx, prep, targets)
    logits_pad = jax.block_until_ready(logits_pad)
    loss = jax.block_until_ready(loss)
    assert logits_pad.shape == (B * T, prep["Vp"])
    # Test-harness slice of the padded layout (the forward itself no longer slices).
    lg = logits_pad[:, :vocab_size].astype(jnp.float32)
    # Tolerances reflect intentional bf16 matmul operands / bf16 logit storage (f32 accumulate);
    # any structural bug (wrong tap order / shift / masking / gather) would be far larger.
    assert jnp.allclose(lg, ref_logits.reshape(B * T, vocab_size), atol=5e-2, rtol=5e-2), float(
        jnp.max(jnp.abs(lg - ref_logits.reshape(B * T, vocab_size))))
    assert jnp.allclose(loss, ref_loss, atol=5e-2, rtol=5e-2), (float(loss), float(ref_loss))

    # Loss-only path (no logits HBM writeback).
    loss_only = jax.block_until_ready(bigram_loss(idx, prep, targets))
    assert jnp.allclose(loss_only, ref_loss, atol=5e-2, rtol=5e-2), (
        float(loss_only), float(ref_loss))

    # No-targets path (f32 logits, padded layout, loss must be None).
    logits_only, no_loss = bigram_forward(idx, prep, None)
    logits_only = jax.block_until_ready(logits_only)
    assert no_loss is None
    assert logits_only.shape == (B, T, prep["Vp"])
    assert jnp.allclose(logits_only[..., :vocab_size], ref_logits, atol=5e-2, rtol=5e-2)

    print("KERNEL_OK")
</pallas_src>

<mosaic_0001>
module attributes {stable_mosaic.version = 11 : i64} {
  func.func @bigram_logits_loss_kernel(%arg0: i32, %arg1: memref<16x1xi32, #tpu.memory_space<vmem>>, %arg2: memref<128x8xf32, #tpu.memory_space<vmem>>, %arg3: memref<16x128xbf16, #tpu.memory_space<vmem>>, %arg4: memref<1x128xf32, #tpu.memory_space<vmem>>, %arg5: memref<16x1xi32, #tpu.memory_space<vmem>>, %arg6: memref<16x128xbf16, #tpu.memory_space<vmem>>, %arg7: memref<1x1xf32, #tpu.memory_space<smem>>) attributes {dimension_semantics = [#tpu.dimension_semantics<arbitrary>], iteration_bounds = array<i64: 1>, scalar_prefetch = 0 : i64, scratch_operands = 0 : i64, tpu.core_type = #tpu.core_type<tc>, window_params = [{pipeline_mode = #tpu.pipeline_mode<synchronous>, transform_indices = @transform_0, window_bounds = array<i64: 16, 1>}, {pipeline_mode = #tpu.pipeline_mode<synchronous>, transform_indices = @transform_1, window_bounds = array<i64: 128, 8>}, {pipeline_mode = #tpu.pipeline_mode<synchronous>, transform_indices = @transform_2, window_bounds = array<i64: 16, 128>}, {pipeline_mode = #tpu.pipeline_mode<synchronous>, transform_indices = @transform_3, window_bounds = array<i64: 1, 128>}, {pipeline_mode = #tpu.pipeline_mode<synchronous>, transform_indices = @transform_4, window_bounds = array<i64: 16, 1>}, {pipeline_mode = #tpu.pipeline_mode<synchronous>, transform_indices = @transform_5, window_bounds = array<i64: 16, 128>}, {transform_indices = @transform_6, window_bounds = array<i64: 1, 1>}]} {
    %0 = tpu.iota {dimensions = array<i32: 1>} : vector<16x128xi32>
    %c0 = arith.constant 0 : index
    %c0_0 = arith.constant 0 : index
    %1 = vector.load %arg1[%c0, %c0_0] : memref<16x1xi32, #tpu.memory_space<vmem>>, vector<16x1xi32>
    %2 = vector.broadcast %1 : vector<16x1xi32> to vector<16x128xi32>
    %3 = arith.cmpi eq, %0, %2 : vector<16x128xi32>
    %4 = arith.extui %3 : vector<16x128xi1> to vector<16x128xi32>
    %5 = arith.sitofp %4 : vector<16x128xi32> to vector<16x128xf32>
    %c0_1 = arith.constant 0 : index
    %c0_2 = arith.constant 0 : index
    %6 = vector.load %arg2[%c0_1, %c0_2] : memref<128x8xf32, #tpu.memory_space<vmem>>, vector<128x8xf32>
    %cst = arith.constant dense<0.000000e+00> : vector<16x8xf32>
    %7 = tpu.matmul %5, %6, %cst {dimension_numbers = #tpu.dot_dimension_numbers<[1], [0], [0], [1], [0, 0, 1, 1], [], []>} : vector<16x128xf32>, vector<128x8xf32>, vector<16x8xf32> -> vector<16x8xf32>
    %c1_i32 = arith.constant 1 : i32
    %8 = tpu.dynamic_rotate %7 by %c1_i32 dim 0 : vector<16x8xf32>, i32 -> vector<16x8xf32>
    %9 = tpu.iota {dimensions = array<i32: 0>} : vector<16x1xi32>
    %c8_i32 = arith.constant 8 : i32
    %c0_i32 = arith.constant 0 : i32
    %10 = arith.cmpi eq, %c8_i32, %c0_i32 : i32
    %c1_i32_3 = arith.constant 1 : i32
    %11 = arith.select %10, %c1_i32_3, %c8_i32 : i32
    %12 = vector.broadcast %11 : i32 to vector<16x1xi32>
    %13 = arith.remsi %9, %12 : vector<16x1xi32>
    %c0_i32_4 = arith.constant 0 : i32
    %14 = vector.broadcast %c0_i32_4 : i32 to vector<16x1xi32>
    %15 = arith.cmpi ne, %13, %14 : vector<16x1xi32>
    %c0_i32_5 = arith.constant 0 : i32
    %16 = vector.broadcast %c0_i32_5 : i32 to vector<16x1xi32>
    %17 = arith.cmpi slt, %13, %16 : vector<16x1xi32>
    %c0_i32_6 = arith.constant 0 : i32
    %18 = arith.cmpi slt, %11, %c0_i32_6 : i32
    %19 = vector.broadcast %18 : i1 to vector<16x1xi1>
    %20 = vector.broadcast %19 : vector<16x1xi1> to vector<16x1xi1>
    %21 = arith.xori %17, %20 : vector<16x1xi1>
    %22 = arith.andi %21, %15 : vector<16x1xi1>
    %23 = vector.broadcast %11 : i32 to vector<16x1xi32>
    %24 = arith.addi %13, %23 : vector<16x1xi32>
    %25 = arith.select %22, %24, %13 : vector<16x1xi1>, vector<16x1xi32>
    %c0_i32_7 = arith.constant 0 : i32
    %26 = vector.broadcast %c0_i32_7 : i32 to vector<16x1xi32>
    %27 = arith.cmpi eq, %25, %26 : vector<16x1xi32>
    %cst_8 = arith.constant 0.000000e+00 : f32
    %28 = vector.shape_cast %27 : vector<16x1xi1> to vector<16x1xi1>
    %29 = vector.broadcast %28 : vector<16x1xi1> to vector<16x8xi1>
    %30 = vector.broadcast %cst_8 : f32 to vector<16x8xf32>
    %31 = arith.select %29, %30, %8 : vector<16x8xi1>, vector<16x8xf32>
    %32 = tpu.concatenate %31, %7 in 1 : vector<16x8xf32>, vector<16x8xf32> -> vector<16x16xf32>
    %33 = arith.truncf %32 : vector<16x16xf32> to vector<16x16xbf16>
    %c0_9 = arith.constant 0 : index
    %c0_10 = arith.constant 0 : index
    %34 = vector.load %arg3[%c0_9, %c0_10] : memref<16x128xbf16, #tpu.memory_space<vmem>>, vector<16x128xbf16>
    %cst_11 = arith.constant dense<0.000000e+00> : vector<16x128xf32>
    %35 = tpu.matmul %33, %34, %cst_11 {dimension_numbers = #tpu.dot_dimension_numbers<[1], [0], [0], [1], [0, 0, 1, 1], [], []>} : vector<16x16xbf16>, vector<16x128xbf16>, vector<16x128xf32> -> vector<16x128xf32>
    %c0_12 = arith.constant 0 : index
    %c0_13 = arith.constant 0 : index
    %36 = vector.load %arg4[%c0_12, %c0_13] : memref<1x128xf32, #tpu.memory_space<vmem>>, vector<1x128xf32>
    %37 = vector.broadcast %36 : vector<1x128xf32> to vector<16x128xf32>
    %38 = arith.addf %35, %37 : vector<16x128xf32>
    %39 = arith.truncf %38 : vector<16x128xf32> to vector<16x128xbf16>
    %c0_14 = arith.constant 0 : index
    %c0_15 = arith.constant 0 : index
    %40 = vector.load %arg6[%c0_14, %c0_15] : memref<16x128xbf16, #tpu.memory_space<vmem>>, vector<16x128xbf16>
    tpu.vector_store %arg6[%c0_14, %c0_15], %39 {strides = array<i32>} : memref<16x128xbf16, #tpu.memory_space<vmem>>, vector<16x128xbf16>,
    %cst_16 = arith.constant dense<0xFF800000> : vector<16xf32>
    %41 = vector.multi_reduction <maximumf>, %38, %cst_16 [1] : vector<16x128xf32> to vector<16xf32>
    %42 = vector.shape_cast %41 : vector<16xf32> to vector<16x1xf32>
    %43 = vector.broadcast %42 : vector<16x1xf32> to vector<16x128xf32>
    %44 = arith.subf %38, %43 : vector<16x128xf32>
    %45 = math.exp %44 : vector<16x128xf32>
    %cst_17 = arith.constant dense<0.000000e+00> : vector<16xf32>
    %46 = vector.multi_reduction <add>, %45, %cst_17 [1] : vector<16x128xf32> to vector<16xf32>
    %47 = vector.shape_cast %46 : vector<16xf32> to vector<16x1xf32>
    %48 = math.log %47 : vector<16x1xf32>
    %49 = arith.addf %42, %48 : vector<16x1xf32>
    %50 = tpu.iota {dimensions = array<i32: 1>} : vector<16x128xi32>
    %c0_18 = arith.constant 0 : index
    %c0_19 = arith.constant 0 : index
    %51 = vector.load %arg5[%c0_18, %c0_19] : memref<16x1xi32, #tpu.memory_space<vmem>>, vector<16x1xi32>
    %52 = vector.broadcast %51 : vector<16x1xi32> to vector<16x128xi32>
    %53 = arith.cmpi eq, %50, %52 : vector<16x128xi32>
    %cst_20 = arith.constant 0.000000e+00 : f32
    %54 = vector.broadcast %cst_20 : f32 to vector<16x128xf32>
    %55 = arith.select %53, %38, %54 : vector<16x128xi1>, vector<16x128xf32>
    %cst_21 = arith.constant dense<0.000000e+00> : vector<16xf32>
    %56 = vector.multi_reduction <add>, %55, %cst_21 [1] : vector<16x128xf32> to vector<16xf32>
    %57 = vector.shape_cast %56 : vector<16xf32> to vector<16x1xf32>
    %58 = arith.subf %49, %57 : vector<16x1xf32>
    %59 = vector.shape_cast %58 : vector<16x1xf32> to vector<1x16x1xf32>
    %cst_22 = arith.constant dense<0.000000e+00> : vector<1xf32>
    %60 = vector.multi_reduction <add>, %59, %cst_22 [1, 2] : vector<1x16x1xf32> to vector<1xf32>
    %61 = vector.shape_cast %60 : vector<1xf32> to vector<1x1x1xf32>
    %62 = vector.extract %61[0, 0, 0] : f32 from vector<1x1x1xf32>
    %cst_23 = arith.constant 6.250000e-02 : f32
    %63 = arith.mulf %62, %cst_23 : f32
    %c0_24 = arith.constant 0 : index
    %c0_25 = arith.constant 0 : index
    %64 = memref.load %arg7[%c0_24, %c0_25] : memref<1x1xf32, #tpu.memory_space<smem>>
    memref.store %63, %arg7[%c0_24, %c0_25] : memref<1x1xf32, #tpu.memory_space<smem>>
    return
  }
  func.func @transform_0(%arg0: i32) -> (i32, i32) {
    %c0_i32 = arith.constant 0 : i32
    %c0_i32_0 = arith.constant 0 : i32
    %c0_i32_1 = arith.constant 0 : i32
    return %c0_i32, %c0_i32_0 : i32, i32
  }
  func.func @transform_1(%arg0: i32) -> (i32, i32) {
    %c0_i32 = arith.constant 0 : i32
    %c0_i32_0 = arith.constant 0 : i32
    %c0_i32_1 = arith.constant 0 : i32
    return %c0_i32, %c0_i32_0 : i32, i32
  }
  func.func @transform_2(%arg0: i32) -> (i32, i32) {
    %c0_i32 = arith.constant 0 : i32
    %c0_i32_0 = arith.constant 0 : i32
    %c0_i32_1 = arith.constant 0 : i32
    return %c0_i32, %c0_i32_0 : i32, i32
  }
  func.func @transform_3(%arg0: i32) -> (i32, i32) {
    %c0_i32 = arith.constant 0 : i32
    %c0_i32_0 = arith.constant 0 : i32
    %c0_i32_1 = arith.constant 0 : i32
    return %c0_i32, %c0_i32_0 : i32, i32
  }
  func.func @transform_4(%arg0: i32) -> (i32, i32) {
    %c0_i32 = arith.constant 0 : i32
    %c0_i32_0 = arith.constant 0 : i32
    %c0_i32_1 = arith.constant 0 : i32
    return %c0_i32, %c0_i32_0 : i32, i32
  }
  func.func @transform_5(%arg0: i32) -> (i32, i32) {
    %c0_i32 = arith.constant 0 : i32
    %c0_i32_0 = arith.constant 0 : i32
    %c0_i32_1 = arith.constant 0 : i32
    return %c0_i32, %c0_i32_0 : i32, i32
  }
  func.func @transform_6(%arg0: i32) -> (i32, i32) {
    %c0_i32 = arith.constant 0 : i32
    %c0_i32_0 = arith.constant 0 : i32
    %c0_i32_1 = arith.constant 0 : i32
    return %c0_i32, %c0_i32_0 : i32, i32
  }
}

</mosaic_0001>

<llo_original>
// kernel: tpu_custom_call.1
$region0: #{tpu_custom_call.1}
  #allocation0 [shape = 'u32[]', space=smem, size = 0x4, offset = 0x4, fixed_abs, tag = 'smem constant byte address 0x4 - core index']
  #allocation1 [shape = 'u32[144,128]{1,0:T(1,128)}', space=vmem, size = 0x12000, scoped, tag = 'internal scratch']
  %s0 = inlined_call_operand.vmem [shape: s32[16,1], index: 0, kind: input, shape index: {}]
  %s1 = inlined_call_operand.vmem [shape: f32[128,8], index: 1, kind: input, shape index: {}]
  %s2 = inlined_call_operand.vmem [shape: bf16[16,128], index: 2, kind: input, shape index: {}]
  %s3 = inlined_call_operand.vmem [shape: f32[1,128], index: 3, kind: input, shape index: {}]
  %s4 = inlined_call_operand.vmem [shape: s32[16,1], index: 4, kind: input, shape index: {}]
  %s5 = inlined_call_operand.hbm [shape: bf16[16,128], index: 5, kind: output, shape index: {0}]
  %s6 = inlined_call_operand.hbm [shape: f32[1,1], index: 6, kind: output, shape index: {1}]
  %7 = xla_tuple %s5, %s6
  %s8 = sld [smem:[#allocation0]]
  $region38: #{tpu_custom_call.1} parent=0
    _
  %s10 = ssub.s32 1, %s8
  %s11 = scalar_select 0, %s10, %s8
  $region1: #{tpu_custom_call.1} parent=0
    #allocation2 [shape = 'u8[4096]{0}', space=vmem, size = 0x1000, scoped, tag = 'output window, operand 0, single buffered']
    #allocation3 [shape = 's32[1]{0}', space=sflag, size = 0x4, scoped, tag = 'scoped memory for tpu_custom_call.1']
    #allocation4 [shape = 's32[1]{0}', space=sflag, size = 0x4, scoped, tag = 'scoped memory for tpu_custom_call.1']
    #allocation5 [shape = 'u8[512]{0}', space=smem, size = 0x200, scoped, tag = 'output window, operand 1, single buffered']
    %12 = vsyncpa [#allocation3], 0
    %13 = vsyncpa [#allocation4], 0
    // Predicated region
    $region2: #{tpu_custom_call.1} parent=1 // pred_check
      _
    $region3: #{tpu_custom_call.1} parent=1 // pred_check_branch
      %15 = sbr.rel (0) target = $region5
    $region4: #{tpu_custom_call.1} parent=1 // pred_region
      _
    $region5: #{tpu_custom_call.1} parent=1 // pred_fallthru
      _
    // Predicated region
    $region6: #{tpu_custom_call.1} parent=1 // pred_check
      _
    $region7: #{tpu_custom_call.1} parent=1 // pred_check_branch
      %17 = sbr.rel (0) target = $region9
    $region8: #{tpu_custom_call.1} parent=1 // pred_region
      _
    $region9: #{tpu_custom_call.1} parent=1 // pred_fallthru
      _
    // Predicated region
    $region10: #{tpu_custom_call.1} parent=1 // pred_check
      _
    $region11: #{tpu_custom_call.1} parent=1 // pred_check_branch
      %19 = sbr.rel (0) target = $region13
    $region12: #{tpu_custom_call.1} parent=1 // pred_region
      _
    $region13: #{tpu_custom_call.1} parent=1 // pred_fallthru
      _
    // Predicated region
    $region14: #{tpu_custom_call.1} parent=1 // pred_check
      _
    $region15: #{tpu_custom_call.1} parent=1 // pred_check_branch
      %21 = sbr.rel (0) target = $region17
    $region16: #{tpu_custom_call.1} parent=1 // pred_region
      _
    $region17: #{tpu_custom_call.1} parent=1 // pred_fallthru
      _
    // Predicated region
    $region18: #{tpu_custom_call.1} parent=1 // pred_check
      _
    $region19: #{tpu_custom_call.1} parent=1 // pred_check_branch
      %23 = sbr.rel (0) target = $region21
    $region20: #{tpu_custom_call.1} parent=1 // pred_region
      _
    $region21: #{tpu_custom_call.1} parent=1 // pred_fallthru
      _
    %v25 = vlaneseq
    %v26 = vand.u32 %v25, 127
    %v27 = vld [vmem:[%s0] sm:$0xff]
    %v28 = vld [vmem:[%s0 + $0x8] sm:$0xff]
    %29 = vset.pattern.permute.xlu0 0
    %30 = vperm.xlu0 %29, %v27
    %v31 = vpop.permute.xlu0 %30
    %32 = vset.pattern.permute.xlu0 0
    %33 = vperm.xlu0 %32, %v28
    %v34 = vpop.permute.xlu0 %33
    %vm35 = vcmp.eq.s32.totalorder %v26, %v31
    %vm36 = vcmp.eq.s32.totalorder %v26, %v34
    %v37 = vsel %vm35, 1, 0
    %v38 = vsel %vm36, 1, 0
    %v39 = vcvt.s32.f32 %v37
    %v40 = vcvt.s32.f32 %v38
    %v41 = vld [vmem:[%s1] sm:$0xff]
    %v42 = vld [vmem:[%s1 + $0x8] sm:$0xff]
    %v43 = vld [vmem:[%s1 + $0x10] sm:$0xff]
    %v44 = vld [vmem:[%s1 + $0x18] sm:$0xff]
    %v45 = vld [vmem:[%s1 + $0x20] sm:$0xff]
    %v46 = vld [vmem:[%s1 + $0x28] sm:$0xff]
    %v47 = vld [vmem:[%s1 + $0x30] sm:$0xff]
    %v48 = vld [vmem:[%s1 + $0x38] sm:$0xff]
    %v49 = vld [vmem:[%s1 + $0x40] sm:$0xff]
    %v50 = vld [vmem:[%s1 + $0x48] sm:$0xff]
    %v51 = vld [vmem:[%s1 + $0x50] sm:$0xff]
    %v52 = vld [vmem:[%s1 + $0x58] sm:$0xff]
    %v53 = vld [vmem:[%s1 + $0x60] sm:$0xff]
    %v54 = vld [vmem:[%s1 + $0x68] sm:$0xff]
    %v55 = vld [vmem:[%s1 + $0x70] sm:$0xff]
    %v56 = vld [vmem:[%s1 + $0x78] sm:$0xff]
    %57 = vmatprep.subr.mxu0 0.0
    %58 = vmatpush1.msra.mxu0 %v41
    %59 = vmatprep.subr.mxu0 0.0
    %60 = vmatpush1.msra.mxu0 %v42
    %61 = vmatprep.subr.mxu0 0.0
    %62 = vmatpush1.msra.mxu0 %v43
    %63 = vmatprep.subr.mxu0 0.0
    %64 = vmatpush1.msra.mxu0 %v44
    %65 = vmatprep.subr.mxu0 0.0
    %66 = vmatpush1.msra.mxu0 %v45
    %67 = vmatprep.subr.mxu0 0.0
    %68 = vmatpush1.msra.mxu0 %v46
    %69 = vmatprep.subr.mxu0 0.0
    %70 = vmatpush1.msra.mxu0 %v47
    %71 = vmatprep.subr.mxu0 0.0
    %72 = vmatpush1.msra.mxu0 %v48
    %73 = vmatprep.subr.mxu0 0.0
    %74 = vmatpush1.msra.mxu0 %v49
    %75 = vmatprep.subr.mxu0 0.0
    %76 = vmatpush1.msra.mxu0 %v50
    %77 = vmatprep.subr.mxu0 0.0
    %78 = vmatpush1.msra.mxu0 %v51
    %79 = vmatprep.subr.mxu0 0.0
    %80 = vmatpush1.msra.mxu0 %v52
    %81 = vmatprep.subr.mxu0 0.0
    %82 = vmatpush1.msra.mxu0 %v53
    %83 = vmatprep.subr.mxu0 0.0
    %84 = vmatpush1.msra.mxu0 %v54
    %85 = vmatprep.subr.mxu0 0.0
    %86 = vmatpush1.msra.mxu0 %v55
    %87 = vmatprep.subr.mxu0 0.0
    %88 = vmatpush1.msra.mxu0 %v56
    %89 = vmatprep.subr.mxu0 0.0
    %90 = vmatpush1.msra.mxu0 0.0
    %91 = vmatprep.subr.mxu0 0.0
    %92 = vmatpush1.msra.mxu0 0.0
    %93 = vmatprep.subr.mxu0 0.0
    %94 = vmatpush1.msra.mxu0 0.0
    %95 = vmatprep.subr.mxu0 0.0
    %96 = vmatpush1.msra.mxu0 0.0
    %97 = vmatprep.subr.mxu0 0.0
    %98 = vmatpush1.msra.mxu0 0.0
    %99 = vmatprep.subr.mxu0 0.0
    %100 = vmatpush1.msra.mxu0 0.0
    %101 = vmatprep.subr.mxu0 0.0
    %102 = vmatpush1.msra.mxu0 0.0
    %103 = vmatprep.subr.mxu0 0.0
    %104 = vmatpush1.msra.mxu0 0.0
    %105 = vmatprep.subr.mxu0 0.0
    %106 = vmatpush1.msra.mxu0 0.0
    %107 = vmatprep.subr.mxu0 0.0
    %108 = vmatpush1.msra.mxu0 0.0
    %109 = vmatprep.subr.mxu0 0.0
    %110 = vmatpush1.msra.mxu0 0.0
    %111 = vmatprep.subr.mxu0 0.0
    %112 = vmatpush1.msra.mxu0 0.0
    %113 = vmatprep.subr.mxu0 0.0
    %114 = vmatpush1.msra.mxu0 0.0
    %115 = vmatprep.subr.mxu0 0.0
    %116 = vmatpush1.msra.mxu0 0.0
    %117 = vmatprep.subr.mxu0 0.0
    %118 = vmatpush1.msra.mxu0 0.0
    %119 = vmatprep.subr.mxu0 0.0
    %120 = vmatpush1.msra.mxu0 0.0
    %121 = vmatprep.mubr.f32.mxu0 0.0
    %122 = vmatmul.mubr.f32.gmra.mrb[0].mxu0 %v39
    %v123 = vpop.f32.mrb[0].mxu0
    %v124 = vadd.f32 0.0, %v123
    %v125 = vpop.f32.mrb[0].mxu0
    %126 = vmatprep.mubr.f32.mxu0 0.0
    %127 = vmatmul.mubr.f32.gmra.mrb[0].mxu0 %v40
    %v128 = vpop.f32.mrb[0].mxu0
    %v129 = vadd.f32 0.0, %v128
    %v130 = vpop.f32.mrb[0].mxu0
    %131 = vdwg.mxu0
    %v132 = vrot.slane %v124, 7
    %v133 = vrot.slane %v129, 7
    %v134 = vlaneseq
    %v135 = vshrl.u32 %v134, 7
    %vm136 = vcmp.lt.s32.totalorder %v135, 1
    %v137 = vsel %vm136, %v132, %v133
    %v138 = vsel %vm136, %v133, %v132
    %v139 = vadd.s32 %v135, 8
    %vm140 = vcmp.lt.s32.totalorder %v135, 0
    %v141 = vsub.s32 0, %v135
    %v142 = vsel %vm140, %v141, %v135
    %v143 = vshrl.u32 %v142, 3
    %v144 = vand.u32 %v142, 7
    %v145 = vsub.s32 0, %v144
    %v146 = vsel %vm140, %v145, %v144
    %vm147 = vcmp.lt.s32.totalorder %v139, 0
    %v148 = vsub.s32 0, %v139
    %v149 = vsel %vm147, %v148, %v139
    %v150 = vshrl.u32 %v149, 3
    %v151 = vand.u32 %v149, 7
    %v152 = vsub.s32 0, %v151
    %v153 = vsel %vm147, %v152, %v151
    %vm154 = vcmp.ne.s32.totalorder %v146, 0
    %vm155 = vcmp.ne.s32.totalorder %v153, 0
    %vm156 = vcmp.lt.s32.totalorder %v146, 0
    %vm157 = vcmp.lt.s32.totalorder %v153, 0
    %vm158 = vmand %vm156, %vm154
    %vm159 = vmand %vm157, %vm155
    %v160 = vadd.s32 %v146, 8
    %v161 = vadd.s32 %v153, 8
    %v162 = vsel %vm158, %v160, %v146
    %v163 = vsel %vm159, %v161, %v153
    %vm164 = vcmp.eq.s32.totalorder %v162, 0
    %vm165 = vcmp.eq.s32.totalorder %v163, 0
    %v166 = vsel %vm164, 1, 0
    %v167 = vsel %vm165, 1, 0
    %vm168 = vcmp.eq.s32.totalorder %v166, 1
    %vm169 = vcmp.eq.s32.totalorder %v167, 1
    %v170 = vsel %vm168, 0.0, %v138
    %v171 = vsel %vm169, 0.0, %v137
    %174 = vrot.lane.b32.xlu0 %v124, 8
    %v175 = vpop.permute.xlu0 %174
    %176 = vrot.lane.b32.xlu0 %v129, 8
    %v177 = vpop.permute.xlu0 %176
    %vm180 = vcmask 64512
    %v181 = vsel %vm180, %v170, %v175
    %v182 = vsel %vm180, %v171, %v177
    %v183 = vpack.c.bf16 %v182, %v181
    %v184 = vld [vmem:[%s2] sm:$0xf]
    %v185 = vld [vmem:[%s2 + $0x4] sm:$0xf]
    %v186 = vld [vmem:[%s3] sm:$0x1]
    %v188 = vlaneseq
    %v189 = vshrl.u32 %v188, 7
    %v190 = vsub.s32 0, %v189
    %v191 = vrot.slane %v186, %v190
    %v195 = vunpack.c.l.b16 %v184
    %v196 = vunpack.c.l.b16 %v185
    %v197 = vpack.c.b16 %v196, %v195
    %vm199 = vcmask 130048
    %v201 = vsel %vm199, %v183, 0
    %203 = vmatprep.subr.bf16.mxu0 0
    %204 = vmatpush1.bf16.msra.mxu0 %v197
    %205 = vmatprep.subr.bf16.mxu0 0
    %206 = vmatpush1.bf16.msra.mxu0 0
    %207 = vmatprep.subr.bf16.mxu0 0
    %208 = vmatpush1.bf16.msra.mxu0 0
    %209 = vmatprep.subr.bf16.mxu0 0
    %210 = vmatpush1.bf16.msra.mxu0 0
    %211 = vmatprep.subr.bf16.mxu0 0
    %212 = vmatpush1.bf16.msra.mxu0 0
    %213 = vmatprep.subr.bf16.mxu0 0
    %214 = vmatpush1.bf16.msra.mxu0 0
    %215 = vmatprep.subr.bf16.mxu0 0
    %216 = vmatpush1.bf16.msra.mxu0 0
    %217 = vmatprep.subr.bf16.mxu0 0
    %218 = vmatpush1.bf16.msra.mxu0 0
    %219 = vmatprep.subr.bf16.mxu0 0
    %220 = vmatpush1.bf16.msra.mxu0 0
    %221 = vmatprep.subr.bf16.mxu0 0
    %222 = vmatpush1.bf16.msra.mxu0 0
    %223 = vmatprep.subr.bf16.mxu0 0
    %224 = vmatpush1.bf16.msra.mxu0 0
    %225 = vmatprep.subr.bf16.mxu0 0
    %226 = vmatpush1.bf16.msra.mxu0 0
    %227 = vmatprep.subr.bf16.mxu0 0
    %228 = vmatpush1.bf16.msra.mxu0 0
    %229 = vmatprep.subr.bf16.mxu0 0
    %230 = vmatpush1.bf16.msra.mxu0 0
    %231 = vmatprep.subr.bf16.mxu0 0
    %232 = vmatpush1.bf16.msra.mxu0 0
    %233 = vmatprep.subr.bf16.mxu0 0
    %234 = vmatpush1.bf16.msra.mxu0 0
    %235 = vmatprep.mubr.bf16.mxu0 0
    %236 = vmatmul.mubr.bf16.gmra.mrb[0].mxu0 %v201
    %v237 = vpop.f32.mrb[0].mxu0
    %v238 = vadd.f32 %v191, %v237
    %v239 = vpop.f32.mrb[0].mxu0
    %v240 = vpop.f32.mrb[0].mxu0
    %v241 = vadd.f32 %v191, %v240
    %v242 = vpop.f32.mrb[0].mxu0
    %243 = vdwg.mxu0
    %v244 = vpack.c.bf16 %v241, %v238
    %v246 = vunpack.c.l.b16 %v244
    %v247 = vunpack.c.h.b16 %v244
    %v248 = vpack.c.b16 %v246, %v246
    %v249 = vpack.c.b16 %v247, %v247
    %252 = vst [vmem:[#allocation2] sm:$0xf] %v248
    %253 = vst [vmem:[#allocation2 + $0x4] sm:$0xf] %v249
    %254 = vmax.xlane.f32.xlu0 %v238
    %v255 = vpop.xlane.xlu0 %254
    %256 = vmax.xlane.f32.xlu0 %v241
    %v257 = vpop.xlane.xlu0 %256
    %v258 = vsub.f32 %v238, %v255
    %v259 = vsub.f32 %v241, %v257
    %v260 = vmul.f32 %v258, 1.442695
    %v261 = vpow.pop %v260
    %v262 = vmul.f32 %v259, 1.442695
    %v263 = vpow.pop %v262
    %264 = vadd.xlane.f32.xlu0 %v261
    %v265 = vpop.xlane.xlu0 %264
    %266 = vadd.xlane.f32.xlu0 %v263
    %v267 = vpop.xlane.xlu0 %266
    %v268 = vlog2.pop %v265
    %v269 = vmul.f32 %v268, 0.6931472
    %v270 = vlog2.pop %v267
    %v271 = vmul.f32 %v270, 0.6931472
    %v272 = vadd.f32 %v255, %v269
    %v273 = vadd.f32 %v257, %v271
    %v274 = vld [vmem:[%s4] sm:$0xff]
    %v275 = vld [vmem:[%s4 + $0x8] sm:$0xff]
    %276 = vset.pattern.permute.xlu0 0
    %277 = vperm.xlu0 %276, %v274
    %v278 = vpop.permute.xlu0 %277
    %279 = vset.pattern.permute.xlu0 0
    %280 = vperm.xlu0 %279, %v275
    %v281 = vpop.permute.xlu0 %280
    %vm282 = vcmp.eq.s32.totalorder %v26, %v278
    %vm283 = vcmp.eq.s32.totalorder %v26, %v281
    %v284 = vsel %vm282, %v238, 0.0
    %v285 = vsel %vm283, %v241, 0.0
    %286 = vadd.xlane.f32.xlu0 %v284
    %v287 = vpop.xlane.xlu0 %286
    %288 = vadd.xlane.f32.xlu0 %v285
    %v289 = vpop.xlane.xlu0 %288
    %v290 = vsub.f32 %v272, %v287
    %v291 = vsub.f32 %v273, %v289
    %vm292 = vcmask 7168
    %v293 = vsel %vm292, %v290, 0.0
    %v294 = vsel %vm292, %v291, 0.0
    %v295 = vadd.f32 %v293, %v294
    %296 = vadd.xlane.f32.xlu0 %v295
    %v297 = vpop.xlane.xlu0 %296
    %v298 = vrot.slane %v297, 4
    %v299 = vadd.f32 %v297, %v298
    %v300 = vrot.slane %v299, 2
    %v301 = vadd.f32 %v299, %v300
    %v302 = vrot.slane %v301, 1
    %v303 = vadd.f32 %v301, %v302
    %s304 = vtos %v303
    %s305 = smul.f32 %s304, 0.0625
    %s306 = scalar_lea.smem [#allocation5], 0
    %307 = sst [smem:[%s306]] %s305
    // Predicated region
    $region22: #{tpu_custom_call.1} parent=1 // pred_check
      _
    $region23: #{tpu_custom_call.1} parent=1 // pred_check_branch
      %309 = sbr.rel (0) target = $region25
    $region24: #{tpu_custom_call.1} parent=1 // pred_region
      %s311 = ssub.s32 128, 128
      %312 = vsyncadd [#allocation3], %s311
      %s313 = sshll.u32 [#allocation2], 4
      %s314 = int_to_ptr.vmem [resolvable:$true] %s313
      %319 = dma.vmem_to_hbm [thread:$0]  %s314, 128, %s5, [#allocation3], 64, 64, 4
    $region25: #{tpu_custom_call.1} parent=1 // pred_fallthru
      _
    // Predicated region
    $region26: #{tpu_custom_call.1} parent=1 // pred_check
      _
    $region27: #{tpu_custom_call.1} parent=1 // pred_check_branch
      %321 = sbr.rel (0) target = $region29
    $region28: #{tpu_custom_call.1} parent=1 // pred_region
      %s323 = ssub.s32 16, 16
      %324 = vsyncadd [#allocation4], %s323
      %327 = dma.smem_to_hbm [#allocation5], 16, %s6, [#allocation4]
    $region29: #{tpu_custom_call.1} parent=1 // pred_fallthru
      _
    // Predicated region
    $region30: #{tpu_custom_call.1} parent=1 // pred_check
      _
    $region31: #{tpu_custom_call.1} parent=1 // pred_check_branch
      %329 = sbr.rel (0) target = $region33
    $region32: #{tpu_custom_call.1} parent=1 // pred_region
      %330 = dma.done [#allocation3], 128
    $region33: #{tpu_custom_call.1} parent=1 // pred_fallthru
      _
    // Predicated region
    $region34: #{tpu_custom_call.1} parent=1 // pred_check
      _
    $region35: #{tpu_custom_call.1} parent=1 // pred_check_branch
      %332 = sbr.rel (0) target = $region37
    $region36: #{tpu_custom_call.1} parent=1 // pred_region
      %333 = dma.done [#allocation4], 16
    $region37: #{tpu_custom_call.1} parent=1 // pred_fallthru
      _
    %334 = sfence
    %335 = vsyncpa [#allocation3], 1
    %336 = vsyncpa [#allocation4], 1

</llo_original>
